<compile_context>
chip_gen: v7x
topology: tpu7x:2x2x1
jax: 0.10.0
libtpu: 0.0.40
codegen_flags: <defaults>
</compile_context>

<pallas_src>
import jax
import jax.numpy as jnp
from jax.experimental import pallas as pl
from jax.experimental.pallas import tpu as pltpu


def _conv1x1_relu_kernel(x_ref, w_ref, b_ref, o_ref):
    """out = relu(W @ x + b) for one (batch, pixel-tile) grid step.

    x_ref: (C_in, TP)    channels x pixel-tile (NCHW slice, pixels on lanes)
    w_ref: (C_out, C_in) 1x1 conv weight
    b_ref: (C_out, 1)    conv bias (broadcast across lanes)
    o_ref: (C_out, TP)   lane-dense output tile
    """
    x = x_ref[...]
    w = w_ref[...]
    b = b_ref[...]
    c_in = x.shape[0]
    if c_in <= 16:
        # Degenerate contraction dim: do it on the VPU as C_in broadcast FMAs
        # instead of a ~3%-utilised MXU matmul (removes MXU pop/drain from the
        # per-tile critical path; the kernel is HBM-bound either way).
        acc = b + w[:, 0:1] * x[0:1, :]
        for c in range(1, c_in):
            acc = acc + w[:, c:c + 1] * x[c:c + 1, :]
    else:
        acc = jnp.dot(w, x, preferred_element_type=jnp.float32) + b
    o_ref[...] = jnp.maximum(acc, 0.0).astype(o_ref.dtype)


def _pixel_tile(p, c_in, c_out, *, max_tp=8192, vmem_budget=24 << 20):
    """Pick the pixel (lane-axis) tile size.

    Small inputs: one full-extent block (no 128-divisibility constraint).
    Large inputs: a big multiple of 128, capped so double-buffered f32
    input+output tiles stay within ~24 MiB (safe for v7x's smaller VMEM).
    """
    if p <= max_tp:
        return p
    fit = vmem_budget // (8 * (c_in + c_out))  # 2 bufs * (in+out rows) * 4B
    tp = min(max_tp, fit)
    return max(128, (tp // 128) * 128)


def conv1x1_relu_flatten(x_nchw, weight, bias, *, max_tp=8192):
    """1x1 Conv2d + ReLU + Flatten, matching PyTorch NCHW semantics.

    x_nchw: (B, C_in, H, W) float32
    weight: (C_out, C_in)   (PyTorch Conv2d weight (C_out, C_in, 1, 1) squeezed)
    bias:   (C_out,)
    returns: (B, C_out * H * W) float32 (same ordering as nn.Flatten on NCHW)
    """
    B, C_in, H, W = x_nchw.shape
    C_out = weight.shape[0]
    P = H * W

    # Contiguous reshape only — no transpose, no pad, no extra HBM pass.
    x = x_nchw.reshape(B, C_in, P).astype(jnp.float32)
    w = weight.astype(jnp.float32)
    b = bias.reshape(C_out, 1).astype(jnp.float32)

    tp = _pixel_tile(P, C_in, C_out, max_tp=max_tp)
    n_ptiles = pl.cdiv(P, tp)  # ragged last tile handled by Pallas masking

    cost = pl.CostEstimate(
        flops=2 * B * P * C_in * C_out,
        transcendentals=0,
        bytes_accessed=4 * (B * C_in * P + B * C_out * P + C_out * C_in + C_out),
    )

    out = pl.pallas_call(
        _conv1x1_relu_kernel,
        out_shape=jax.ShapeDtypeStruct((B, C_out, P), jnp.float32),
        grid_spec=pltpu.PrefetchScalarGridSpec(
            num_scalar_prefetch=0,
            grid=(B, n_ptiles),
            in_specs=[
                pl.BlockSpec((None, C_in, tp), lambda bi, pi: (bi, 0, pi)),
                pl.BlockSpec((C_out, C_in), lambda bi, pi: (0, 0)),
                pl.BlockSpec((C_out, 1), lambda bi, pi: (0, 0)),
            ],
            out_specs=pl.BlockSpec((None, C_out, tp), lambda bi, pi: (bi, 0, pi)),
        ),
        compiler_params=pltpu.CompilerParams(
            dimension_semantics=("parallel", "parallel")),
        cost_estimate=cost,
    )(x, w, b)

    # (B, C_out, H*W) is already NCHW-flattened order == nn.Flatten on NCHW.
    return out.reshape(B, C_out * P)


class BaseNetworkPallas:
    """JAX/Pallas analogue of BaseNetwork.

    actor_net / critic_net / mask_net are defined by subclasses in PyTorch and
    are None here; forward() is abstract there, so it is abstract here too.
    """

    def __init__(self, obs_shape, action_dim, hidden_dim=100,
                 normalize_images=False, position_encode=False,
                 cnn_shortcut=False, key=None):
        self.obs_shape = obs_shape                # (C, H, W)
        self.action_dim = action_dim
        self.hidden_dim = hidden_dim
        self.normalize_images = normalize_images
        self.position_encode = position_encode
        self.cnn_shortcut = cnn_shortcut
        self.share_input_channels = obs_shape[0]
        self.actor_net = None
        self.critic_net = None
        self.mask_net = None
        self._key = key if key is not None else jax.random.PRNGKey(0)

    def forward(self, observations, interest_mask=None):
        # TODO(synk): forward is abstract in BaseNetwork (NotImplementedError);
        # subclasses define actor/critic/mask nets.
        raise NotImplementedError("forward must be implemented in the subclass")

    def get_init_module_gains(self):
        # TODO(synk): abstract in BaseNetwork as well.
        raise NotImplementedError(
            "get_init_modules method must be implemented in the subclass")

    def _get_n_flatten(self, share_extractor, in_channels, out_channels):
        """Mirror of BaseNetwork._get_n_flatten with the 1x1 conv + ReLU +
        Flatten tmp_layer implemented as a Pallas kernel."""
        # Deterministic "sample" of the Box observation space + Conv2d init.
        k_obs, k_w, k_b = jax.random.split(self._key, 3)
        C, H, W = self.obs_shape
        obs = jax.random.uniform(k_obs, (1, C, H, W), dtype=jnp.float32)

        # PyTorch Conv2d default init: kaiming-uniform-ish bounds (kernel 1x1).
        fan_in = in_channels
        bound = 1.0 / jnp.sqrt(jnp.float32(fan_in))
        weight = jax.random.uniform(
            k_w, (out_channels, in_channels), jnp.float32, -bound, bound)
        bias = jax.random.uniform(
            k_b, (out_channels,), jnp.float32, -bound, bound)

        feats = share_extractor(obs)
        flat = conv1x1_relu_flatten(feats, weight, bias)
        return int(flat.shape[1]), flat, (obs, weight, bias)


if __name__ == "__main__":
    key = jax.random.PRNGKey(0)
    net = BaseNetworkPallas(obs_shape=(4, 16, 16), action_dim=6,
                            hidden_dim=32, key=key)

    identity_extractor = lambda x: x   # actor/critic/mask nets are None

    n_flatten, flat_sample, (obs, weight, bias) = net._get_n_flatten(
        identity_extractor, in_channels=4, out_channels=net.hidden_dim)
    flat_sample = jax.block_until_ready(flat_sample)
    assert n_flatten == net.hidden_dim * 16 * 16, n_flatten

    # Also run the kernel at batch=2 and verify against a pure-JAX reference.
    x = jax.random.normal(jax.random.PRNGKey(1), (2, 4, 16, 16), jnp.float32)
    out = jax.block_until_ready(conv1x1_relu_flatten(x, weight, bias))

    ref = jnp.maximum(
        jnp.einsum("bchw,oc->bohw", x, weight) + bias[None, :, None, None], 0.0
    ).reshape(2, -1)
    assert out.shape == ref.shape, (out.shape, ref.shape)
    assert jnp.allclose(out, ref, atol=1e-5, rtol=1e-5), float(
        jnp.max(jnp.abs(out - ref)))

    print("KERNEL_OK")
</pallas_src>

<mosaic_0001>
module attributes {stable_mosaic.version = 11 : i64} {
  func.func @_conv1x1_relu_kernel(%arg0: i32, %arg1: i32, %arg2: memref<1x4x256xf32, #tpu.memory_space<vmem>>, %arg3: memref<32x4xf32, #tpu.memory_space<vmem>>, %arg4: memref<32x1xf32, #tpu.memory_space<vmem>>, %arg5: memref<1x32x256xf32, #tpu.memory_space<vmem>>) attributes {dimension_semantics = [#tpu.dimension_semantics<parallel>, #tpu.dimension_semantics<parallel>], iteration_bounds = array<i64: 1, 1>, scalar_prefetch = 0 : i64, scratch_operands = 0 : i64, tpu.core_type = #tpu.core_type<tc>, window_params = [{transform_indices = @transform_0, window_bounds = array<i64: 1, 4, 256>}, {pipeline_mode = #tpu.pipeline_mode<synchronous>, transform_indices = @transform_1, window_bounds = array<i64: 32, 4>}, {pipeline_mode = #tpu.pipeline_mode<synchronous>, transform_indices = @transform_2, window_bounds = array<i64: 32, 1>}, {transform_indices = @transform_3, window_bounds = array<i64: 1, 32, 256>}]} {
    %c0 = arith.constant 0 : index
    %c0_0 = arith.constant 0 : index
    %c0_1 = arith.constant 0 : index
    %0 = vector.load %arg2[%c0, %c0_0, %c0_1] : memref<1x4x256xf32, #tpu.memory_space<vmem>>, vector<1x4x256xf32>
    %1 = vector.shape_cast %0 : vector<1x4x256xf32> to vector<4x256xf32>
    %c0_2 = arith.constant 0 : index
    %c0_3 = arith.constant 0 : index
    %2 = vector.load %arg3[%c0_2, %c0_3] : memref<32x4xf32, #tpu.memory_space<vmem>>, vector<32x4xf32>
    %c0_4 = arith.constant 0 : index
    %c0_5 = arith.constant 0 : index
    %3 = vector.load %arg4[%c0_4, %c0_5] : memref<32x1xf32, #tpu.memory_space<vmem>>, vector<32x1xf32>
    %4 = vector.extract_strided_slice %2 {offsets = [0, 0], sizes = [32, 1], strides = [1, 1]} : vector<32x4xf32> to vector<32x1xf32>
    %5 = vector.extract_strided_slice %1 {offsets = [0, 0], sizes = [1, 256], strides = [1, 1]} : vector<4x256xf32> to vector<1x256xf32>
    %6 = vector.broadcast %4 : vector<32x1xf32> to vector<32x256xf32>
    %7 = vector.broadcast %5 : vector<1x256xf32> to vector<32x256xf32>
    %8 = arith.mulf %6, %7 : vector<32x256xf32>
    %9 = vector.broadcast %3 : vector<32x1xf32> to vector<32x256xf32>
    %10 = arith.addf %9, %8 : vector<32x256xf32>
    %11 = vector.extract_strided_slice %2 {offsets = [0, 1], sizes = [32, 1], strides = [1, 1]} : vector<32x4xf32> to vector<32x1xf32>
    %12 = vector.extract_strided_slice %1 {offsets = [1, 0], sizes = [1, 256], strides = [1, 1]} : vector<4x256xf32> to vector<1x256xf32>
    %13 = vector.broadcast %11 : vector<32x1xf32> to vector<32x256xf32>
    %14 = vector.broadcast %12 : vector<1x256xf32> to vector<32x256xf32>
    %15 = arith.mulf %13, %14 : vector<32x256xf32>
    %16 = arith.addf %10, %15 : vector<32x256xf32>
    %17 = vector.extract_strided_slice %2 {offsets = [0, 2], sizes = [32, 1], strides = [1, 1]} : vector<32x4xf32> to vector<32x1xf32>
    %18 = vector.extract_strided_slice %1 {offsets = [2, 0], sizes = [1, 256], strides = [1, 1]} : vector<4x256xf32> to vector<1x256xf32>
    %19 = vector.broadcast %17 : vector<32x1xf32> to vector<32x256xf32>
    %20 = vector.broadcast %18 : vector<1x256xf32> to vector<32x256xf32>
    %21 = arith.mulf %19, %20 : vector<32x256xf32>
    %22 = arith.addf %16, %21 : vector<32x256xf32>
    %23 = vector.extract_strided_slice %2 {offsets = [0, 3], sizes = [32, 1], strides = [1, 1]} : vector<32x4xf32> to vector<32x1xf32>
    %24 = vector.extract_strided_slice %1 {offsets = [3, 0], sizes = [1, 256], strides = [1, 1]} : vector<4x256xf32> to vector<1x256xf32>
    %25 = vector.broadcast %23 : vector<32x1xf32> to vector<32x256xf32>
    %26 = vector.broadcast %24 : vector<1x256xf32> to vector<32x256xf32>
    %27 = arith.mulf %25, %26 : vector<32x256xf32>
    %28 = arith.addf %22, %27 : vector<32x256xf32>
    %cst = arith.constant 0.000000e+00 : f32
    %29 = vector.broadcast %cst : f32 to vector<32x256xf32>
    %30 = arith.maximumf %28, %29 : vector<32x256xf32>
    %c0_6 = arith.constant 0 : index
    %c0_7 = arith.constant 0 : index
    %c0_8 = arith.constant 0 : index
    %31 = vector.load %arg5[%c0_6, %c0_7, %c0_8] : memref<1x32x256xf32, #tpu.memory_space<vmem>>, vector<1x32x256xf32>
    %32 = vector.shape_cast %31 : vector<1x32x256xf32> to vector<32x256xf32>
    %33 = vector.shape_cast %30 : vector<32x256xf32> to vector<1x32x256xf32>
    tpu.vector_store %arg5[%c0_6, %c0_7, %c0_8], %33 {strides = array<i32>} : memref<1x32x256xf32, #tpu.memory_space<vmem>>, vector<1x32x256xf32>,
    return
  }
  func.func @transform_0(%arg0: i32, %arg1: i32) -> (i32, i32, i32) {
    %c0_i32 = arith.constant 0 : i32
    %c0_i32_0 = arith.constant 0 : i32
    return %arg0, %c0_i32, %arg1 : i32, i32, i32
  }
  func.func @transform_1(%arg0: i32, %arg1: i32) -> (i32, i32) {
    %c0_i32 = arith.constant 0 : i32
    %c0_i32_0 = arith.constant 0 : i32
    %c0_i32_1 = arith.constant 0 : i32
    return %c0_i32, %c0_i32_0 : i32, i32
  }
  func.func @transform_2(%arg0: i32, %arg1: i32) -> (i32, i32) {
    %c0_i32 = arith.constant 0 : i32
    %c0_i32_0 = arith.constant 0 : i32
    %c0_i32_1 = arith.constant 0 : i32
    return %c0_i32, %c0_i32_0 : i32, i32
  }
  func.func @transform_3(%arg0: i32, %arg1: i32) -> (i32, i32, i32) {
    %c0_i32 = arith.constant 0 : i32
    %c0_i32_0 = arith.constant 0 : i32
    return %arg0, %c0_i32, %arg1 : i32, i32, i32
  }
}

</mosaic_0001>

<llo_original>
// kernel: tpu_custom_call.1
$region0: #{tpu_custom_call.1}
  #allocation0 [shape = 'u32[]', space=smem, size = 0x4, offset = 0x4, fixed_abs, tag = 'smem constant byte address 0x4 - core index']
  #allocation1 [shape = 'u32[144,128]{1,0:T(1,128)}', space=vmem, size = 0x12000, scoped, tag = 'internal scratch']
  %s0 = inlined_call_operand.vmem [shape: f32[1,4,256], index: 0, kind: input, shape index: {}]
  %s1 = inlined_call_operand.vmem [shape: f32[32,4], index: 1, kind: input, shape index: {}]
  %s2 = inlined_call_operand.vmem [shape: f32[32,1], index: 2, kind: input, shape index: {}]
  %s3 = inlined_call_operand.hbm [shape: f32[1,32,256], index: 3, kind: output, shape index: {}]
  %s4 = sld [smem:[#allocation0]]
  $region22: #{tpu_custom_call.1} parent=0
    _
  %s6 = ssub.s32 1, %s4
  %s7 = scalar_select 0, %s6, %s4
  $region1: #{tpu_custom_call.1} parent=0
    #allocation2 [shape = 'u8[32768]{0}', space=vmem, size = 0x8000, scoped, tag = 'output window, operand 0, single buffered']
    #allocation3 [shape = 's32[1]{0}', space=sflag, size = 0x4, scoped, tag = 'scoped memory for tpu_custom_call.1']
    %8 = vsyncpa [#allocation3], 0
    // Predicated region
    $region2: #{tpu_custom_call.1} parent=1 // pred_check
      _
    $region3: #{tpu_custom_call.1} parent=1 // pred_check_branch
      %10 = sbr.rel (0) target = $region5
    $region4: #{tpu_custom_call.1} parent=1 // pred_region
      _
    $region5: #{tpu_custom_call.1} parent=1 // pred_fallthru
      _
    // Predicated region
    $region6: #{tpu_custom_call.1} parent=1 // pred_check
      _
    $region7: #{tpu_custom_call.1} parent=1 // pred_check_branch
      %12 = sbr.rel (0) target = $region9
    $region8: #{tpu_custom_call.1} parent=1 // pred_region
      _
    $region9: #{tpu_custom_call.1} parent=1 // pred_fallthru
      _
    // Predicated region
    $region10: #{tpu_custom_call.1} parent=1 // pred_check
      _
    $region11: #{tpu_custom_call.1} parent=1 // pred_check_branch
      %14 = sbr.rel (0) target = $region13
    $region12: #{tpu_custom_call.1} parent=1 // pred_region
      _
    $region13: #{tpu_custom_call.1} parent=1 // pred_fallthru
      _
    %v15 = vld [vmem:[%s0] sm:$0xff]
    %v16 = vld [vmem:[%s1] sm:$0xff]
    %v17 = vld [vmem:[%s1 + $0x8] sm:$0xff]
    %v18 = vld [vmem:[%s1 + $0x10] sm:$0xff]
    %v19 = vld [vmem:[%s1 + $0x18] sm:$0xff]
    %v20 = vld [vmem:[%s2] sm:$0xff]
    %v21 = vld [vmem:[%s2 + $0x8] sm:$0xff]
    %v22 = vld [vmem:[%s2 + $0x10] sm:$0xff]
    %v23 = vld [vmem:[%s2 + $0x18] sm:$0xff]
    %25 = vset.pattern.permute.xlu0 0
    %26 = vperm.xlu0 %25, %v16
    %v27 = vpop.permute.xlu0 %26
    %30 = vset.pattern.permute.xlu0 0
    %31 = vperm.xlu0 %30, %v17
    %v32 = vpop.permute.xlu0 %31
    %35 = vset.pattern.permute.xlu0 0
    %36 = vperm.xlu0 %35, %v18
    %v37 = vpop.permute.xlu0 %36
    %40 = vset.pattern.permute.xlu0 0
    %41 = vperm.xlu0 %40, %v19
    %v42 = vpop.permute.xlu0 %41
    %v45 = vlaneseq
    %v46 = vshrl.u32 %v45, 7
    %v47 = vsub.s32 0, %v46
    %v48 = vrot.slane %v15, %v47
    %v49 = vlaneseq
    %v50 = vshrl.u32 %v49, 7
    %v51 = vsub.s32 4, %v50
    %v52 = vrot.slane %v15, %v51
    %v55 = vlaneseq
    %v56 = vshrl.u32 %v55, 7
    %v57 = vsub.s32 0, %v56
    %v58 = vrot.slane %v48, %v57
    %v59 = vlaneseq
    %v60 = vshrl.u32 %v59, 7
    %v61 = vsub.s32 0, %v60
    %v62 = vrot.slane %v52, %v61
    %v63 = vmul.f32 %v27, %v58
    %v64 = vmul.f32 %v27, %v62
    %v65 = vmul.f32 %v32, %v58
    %v66 = vmul.f32 %v32, %v62
    %v67 = vmul.f32 %v37, %v58
    %v68 = vmul.f32 %v37, %v62
    %v69 = vmul.f32 %v42, %v58
    %v70 = vmul.f32 %v42, %v62
    %72 = vset.pattern.permute.xlu0 0
    %73 = vperm.xlu0 %72, %v20
    %v74 = vpop.permute.xlu0 %73
    %77 = vset.pattern.permute.xlu0 0
    %78 = vperm.xlu0 %77, %v21
    %v79 = vpop.permute.xlu0 %78
    %82 = vset.pattern.permute.xlu0 0
    %83 = vperm.xlu0 %82, %v22
    %v84 = vpop.permute.xlu0 %83
    %87 = vset.pattern.permute.xlu0 0
    %88 = vperm.xlu0 %87, %v23
    %v89 = vpop.permute.xlu0 %88
    %v91 = vadd.f32 %v74, %v63
    %v92 = vadd.f32 %v74, %v64
    %v93 = vadd.f32 %v79, %v65
    %v94 = vadd.f32 %v79, %v66
    %v95 = vadd.f32 %v84, %v67
    %v96 = vadd.f32 %v84, %v68
    %v97 = vadd.f32 %v89, %v69
    %v98 = vadd.f32 %v89, %v70
    %99 = vset.pattern.permute.xlu0 1
    %100 = vperm.xlu0 %99, %v16
    %v101 = vpop.permute.xlu0 %100
    %103 = vset.pattern.permute.xlu0 1
    %104 = vperm.xlu0 %103, %v17
    %v105 = vpop.permute.xlu0 %104
    %107 = vset.pattern.permute.xlu0 1
    %108 = vperm.xlu0 %107, %v18
    %v109 = vpop.permute.xlu0 %108
    %111 = vset.pattern.permute.xlu0 1
    %112 = vperm.xlu0 %111, %v19
    %v113 = vpop.permute.xlu0 %112
    %v115 = vlaneseq
    %v116 = vshrl.u32 %v115, 7
    %v117 = vsub.s32 1, %v116
    %v118 = vrot.slane %v15, %v117
    %v119 = vlaneseq
    %v120 = vshrl.u32 %v119, 7
    %v121 = vsub.s32 5, %v120
    %v122 = vrot.slane %v15, %v121
    %v125 = vlaneseq
    %v126 = vshrl.u32 %v125, 7
    %v127 = vsub.s32 1, %v126
    %v128 = vrot.slane %v118, %v127
    %v129 = vlaneseq
    %v130 = vshrl.u32 %v129, 7
    %v131 = vsub.s32 1, %v130
    %v132 = vrot.slane %v122, %v131
    %v133 = vmul.f32 %v101, %v128
    %v134 = vmul.f32 %v101, %v132
    %v135 = vmul.f32 %v105, %v128
    %v136 = vmul.f32 %v105, %v132
    %v137 = vmul.f32 %v109, %v128
    %v138 = vmul.f32 %v109, %v132
    %v139 = vmul.f32 %v113, %v128
    %v140 = vmul.f32 %v113, %v132
    %v141 = vadd.f32 %v91, %v133
    %v142 = vadd.f32 %v92, %v134
    %v143 = vadd.f32 %v93, %v135
    %v144 = vadd.f32 %v94, %v136
    %v145 = vadd.f32 %v95, %v137
    %v146 = vadd.f32 %v96, %v138
    %v147 = vadd.f32 %v97, %v139
    %v148 = vadd.f32 %v98, %v140
    %149 = vset.pattern.permute.xlu0 2
    %150 = vperm.xlu0 %149, %v16
    %v151 = vpop.permute.xlu0 %150
    %153 = vset.pattern.permute.xlu0 2
    %154 = vperm.xlu0 %153, %v17
    %v155 = vpop.permute.xlu0 %154
    %157 = vset.pattern.permute.xlu0 2
    %158 = vperm.xlu0 %157, %v18
    %v159 = vpop.permute.xlu0 %158
    %161 = vset.pattern.permute.xlu0 2
    %162 = vperm.xlu0 %161, %v19
    %v163 = vpop.permute.xlu0 %162
    %v165 = vlaneseq
    %v166 = vshrl.u32 %v165, 7
    %v167 = vsub.s32 2, %v166
    %v168 = vrot.slane %v15, %v167
    %v169 = vlaneseq
    %v170 = vshrl.u32 %v169, 7
    %v171 = vsub.s32 6, %v170
    %v172 = vrot.slane %v15, %v171
    %v175 = vlaneseq
    %v176 = vshrl.u32 %v175, 7
    %v177 = vsub.s32 2, %v176
    %v178 = vrot.slane %v168, %v177
    %v179 = vlaneseq
    %v180 = vshrl.u32 %v179, 7
    %v181 = vsub.s32 2, %v180
    %v182 = vrot.slane %v172, %v181
    %v183 = vmul.f32 %v151, %v178
    %v184 = vmul.f32 %v151, %v182
    %v185 = vmul.f32 %v155, %v178
    %v186 = vmul.f32 %v155, %v182
    %v187 = vmul.f32 %v159, %v178
    %v188 = vmul.f32 %v159, %v182
    %v189 = vmul.f32 %v163, %v178
    %v190 = vmul.f32 %v163, %v182
    %v191 = vadd.f32 %v141, %v183
    %v192 = vadd.f32 %v142, %v184
    %v193 = vadd.f32 %v143, %v185
    %v194 = vadd.f32 %v144, %v186
    %v195 = vadd.f32 %v145, %v187
    %v196 = vadd.f32 %v146, %v188
    %v197 = vadd.f32 %v147, %v189
    %v198 = vadd.f32 %v148, %v190
    %199 = vset.pattern.permute.xlu0 3
    %200 = vperm.xlu0 %199, %v16
    %v201 = vpop.permute.xlu0 %200
    %203 = vset.pattern.permute.xlu0 3
    %204 = vperm.xlu0 %203, %v17
    %v205 = vpop.permute.xlu0 %204
    %207 = vset.pattern.permute.xlu0 3
    %208 = vperm.xlu0 %207, %v18
    %v209 = vpop.permute.xlu0 %208
    %211 = vset.pattern.permute.xlu0 3
    %212 = vperm.xlu0 %211, %v19
    %v213 = vpop.permute.xlu0 %212
    %v215 = vlaneseq
    %v216 = vshrl.u32 %v215, 7
    %v217 = vsub.s32 3, %v216
    %v218 = vrot.slane %v15, %v217
    %v219 = vlaneseq
    %v220 = vshrl.u32 %v219, 7
    %v221 = vsub.s32 7, %v220
    %v222 = vrot.slane %v15, %v221
    %v225 = vlaneseq
    %v226 = vshrl.u32 %v225, 7
    %v227 = vsub.s32 3, %v226
    %v228 = vrot.slane %v218, %v227
    %v229 = vlaneseq
    %v230 = vshrl.u32 %v229, 7
    %v231 = vsub.s32 3, %v230
    %v232 = vrot.slane %v222, %v231
    %v233 = vmul.f32 %v201, %v228
    %v234 = vmul.f32 %v201, %v232
    %v235 = vmul.f32 %v205, %v228
    %v236 = vmul.f32 %v205, %v232
    %v237 = vmul.f32 %v209, %v228
    %v238 = vmul.f32 %v209, %v232
    %v239 = vmul.f32 %v213, %v228
    %v240 = vmul.f32 %v213, %v232
    %v241 = vadd.f32 %v191, %v233
    %v242 = vadd.f32 %v192, %v234
    %v243 = vadd.f32 %v193, %v235
    %v244 = vadd.f32 %v194, %v236
    %v245 = vadd.f32 %v195, %v237
    %v246 = vadd.f32 %v196, %v238
    %v247 = vadd.f32 %v197, %v239
    %v248 = vadd.f32 %v198, %v240
    %v249 = vmax.f32 %v241, 0.0
    %v250 = vmax.f32 %v242, 0.0
    %v251 = vmax.f32 %v243, 0.0
    %v252 = vmax.f32 %v244, 0.0
    %v253 = vmax.f32 %v245, 0.0
    %v254 = vmax.f32 %v246, 0.0
    %v255 = vmax.f32 %v247, 0.0
    %v256 = vmax.f32 %v248, 0.0
    %257 = vst [vmem:[#allocation2] sm:$0xff] %v249
    %258 = vst [vmem:[#allocation2 + $0x8] sm:$0xff] %v250
    %259 = vst [vmem:[#allocation2 + $0x10] sm:$0xff] %v251
    %260 = vst [vmem:[#allocation2 + $0x18] sm:$0xff] %v252
    %261 = vst [vmem:[#allocation2 + $0x20] sm:$0xff] %v253
    %262 = vst [vmem:[#allocation2 + $0x28] sm:$0xff] %v254
    %263 = vst [vmem:[#allocation2 + $0x30] sm:$0xff] %v255
    %264 = vst [vmem:[#allocation2 + $0x38] sm:$0xff] %v256
    // Predicated region
    $region14: #{tpu_custom_call.1} parent=1 // pred_check
      _
    $region15: #{tpu_custom_call.1} parent=1 // pred_check_branch
      %266 = sbr.rel (0) target = $region17
    $region16: #{tpu_custom_call.1} parent=1 // pred_region
      %s268 = ssub.s32 1024, 1024
      %269 = vsyncadd [#allocation3], %s268
      %s270 = sshll.u32 [#allocation2], 4
      %s271 = int_to_ptr.vmem [resolvable:$true] %s270
      %276 = dma.vmem_to_hbm [thread:$0]  %s271, 1024, %s3, [#allocation3], 256, 256, 16
    $region17: #{tpu_custom_call.1} parent=1 // pred_fallthru
      _
    // Predicated region
    $region18: #{tpu_custom_call.1} parent=1 // pred_check
      _
    $region19: #{tpu_custom_call.1} parent=1 // pred_check_branch
      %278 = sbr.rel (0) target = $region21
    $region20: #{tpu_custom_call.1} parent=1 // pred_region
      %279 = dma.done [#allocation3], 1024
    $region21: #{tpu_custom_call.1} parent=1 // pred_fallthru
      _
    %280 = vsyncpa [#allocation3], 1

</llo_original>
